<compile_context>
chip_gen: v7x
topology: tpu7x:2x2x1
jax: 0.10.0
libtpu: 0.0.40
codegen_flags: <defaults>
</compile_context>

<pallas_src>
import math

import jax
import jax.numpy as jnp
import numpy as np
from jax import lax
from jax.experimental import pallas as pl
from jax.experimental.pallas import tpu as pltpu

KSIZE = 7     # spatial-attention conv kernel size
PAD = 3       # spatial-attention conv padding
LANE = 128    # TPU lane width

_VMEM_LIMIT_BYTES = 48 * 1024 * 1024   # scoped-VMEM request (fits v5e/v6e/v7x)
_VMEM_BUDGET_BYTES = 40 * 1024 * 1024  # budget used when sizing the batch tile

_ROLL_RIGHT = None


def _roll_rolls_right():
    """One-time hardware probe of the pltpu.roll convention.

    Returns True iff pltpu.roll follows np.roll semantics
    (out[p] = in[(p - shift) % N]).  The answer only flips the sign of the
    static shifts used for the 7x7 conv taps, so the kernel is robust to
    convention drift across jax versions.
    """
    global _ROLL_RIGHT
    if _ROLL_RIGHT is None:
        def probe(x_ref, o_ref):
            o_ref[...] = pltpu.roll(x_ref[...], 1, axis=1)

        x = lax.broadcasted_iota(jnp.int32, (8, LANE), 1)
        y = pl.pallas_call(
            probe, out_shape=jax.ShapeDtypeStruct((8, LANE), jnp.int32))(x)
        _ROLL_RIGHT = bool(int(y[0, 1]) == 0)
    return _ROLL_RIGHT


def _make_cbam_kernel(H, W, HW, HWp, C, c_chunk, compute_dtype, roll_right):
    inv_hw = 1.0 / HW
    inv_c = 1.0 / C
    cdt = compute_dtype

    def kernel(x_ref, w1_ref, b1_ref, w2_ref, b2_ref, cw_ref, cb_ref, o_ref):
        Bt = x_ref.shape[0]
        f32 = jnp.float32

        # ---------------- channel attention ----------------
        # Spatial avg/max pooling: lane reductions over the flattened H*W axis.
        xv = x_ref[...]                                       # (Bt, C, HWp)
        if HWp != HW:
            lane = lax.broadcasted_iota(jnp.int32, (1, 1, HWp), 2)
            mx = jnp.max(jnp.where(lane < HW, xv, -jnp.inf), axis=2)
        else:
            mx = jnp.max(xv, axis=2)                          # (Bt, C)
        avg = jnp.sum(xv, axis=2) * inv_hw                    # pad lanes are 0
        pooled = jnp.concatenate([avg, mx], axis=0)           # (2*Bt, C)

        # Shared MLP, batched over all pooled vectors of this block (MXU).
        h1 = jnp.dot(pooled, w1_ref[...],
                     preferred_element_type=f32) + b1_ref[...]
        h1 = jnp.maximum(h1, 0.0)
        o2 = jnp.dot(h1, w2_ref[...],
                     preferred_element_type=f32) + b2_ref[...]
        ca = jax.nn.sigmoid(o2[:Bt] + o2[Bt:])                # (Bt, C)

        # ---- channel mean / max of (x * ca), chunked over C (no `out1`) ----
        # One per-chunk product feeds both reductions; only a (Bt, c_chunk,
        # HWp) slab is ever live instead of a second full tile.
        avg_acc = jnp.zeros((Bt, HWp), f32)
        max_acc = jnp.full((Bt, HWp), -jnp.inf, f32)
        for c0 in range(0, C, c_chunk):
            blk = (x_ref[:, c0:c0 + c_chunk, :]
                   * ca[:, c0:c0 + c_chunk][:, :, None])      # (Bt, ck, HWp)
            avg_acc = avg_acc + jnp.sum(blk, axis=1)
            max_acc = jnp.maximum(max_acc, jnp.max(blk, axis=1))
        avg_map = avg_acc * inv_c
        maps = jnp.stack([avg_map, max_acc], axis=1).astype(cdt)  # (Bt, 2, HWp)

        # ---------------- spatial attention: 7x7 conv ----------------
        # Per-tap XLU lane rotation (shift = di*W + dj) of the stacked
        # avg/max maps + iota boundary masks reproduce the zero-padded conv.
        # Rolls are recomputed per tap (XLU slot is otherwise idle) so only
        # `maps` and `acc` stay live -- no 14 hoisted shifted copies.
        pos = lax.broadcasted_iota(jnp.int32, (1, 1, HWp), 2)
        hpos = pos // W
        wpos = pos - hpos * W
        col_ok = [jnp.logical_and(wpos + dj >= 0, wpos + dj < W)
                  for dj in range(-PAD, PAD + 1)]

        acc = jnp.full((Bt, HWp), cb_ref[0, 0], f32)
        for di in range(-PAD, PAD + 1):
            row_ok = jnp.logical_and(hpos + di >= 0, hpos + di < H)
            for dj in range(-PAD, PAD + 1):
                t = (di + PAD) * KSIZE + (dj + PAD)
                s0 = di * W + dj
                shift = (-s0) % HWp if roll_right else s0 % HWp
                r = maps if shift == 0 else pltpu.roll(maps, shift, axis=2)
                tap = jnp.where(
                    jnp.logical_and(row_ok, col_ok[dj + PAD]), r, 0.0)
                w_avg = cw_ref[0, t].astype(cdt)
                w_max = cw_ref[1, t].astype(cdt)
                acc = acc + (tap[:, 0, :] * w_avg
                             + tap[:, 1, :] * w_max).astype(f32)
        sa = jax.nn.sigmoid(acc).astype(cdt)[:, None, :]      # (Bt, 1, HWp)

        # -------- fused, chunked, lane-dense output store: x * ca * sa -------
        for c0 in range(0, C, c_chunk):
            xc = x_ref[:, c0:c0 + c_chunk, :].astype(cdt)
            cac = ca[:, c0:c0 + c_chunk].astype(cdt)[:, :, None]
            o_ref[:, c0:c0 + c_chunk, :] = (xc * cac * sa).astype(o_ref.dtype)

    return kernel


def _estimate_vmem_bytes(bt, C, HWp, out_itemsize):
    io = 2 * bt * C * HWp * (4 + out_itemsize)     # double-buffered in/out windows
    maps = 16 * bt * HWp * 4                       # pooled maps / masks / acc / sa
    chunk = 4 * bt * min(C, 8) * HWp * 4           # per-chunk temporaries
    return io + maps + chunk + (1 << 20)           # weights + slack


def _pick_batch_tile(B, C, HWp, max_batch_tile, out_itemsize):
    bt = max(1, min(max_batch_tile, B))
    while bt > 1 and _estimate_vmem_bytes(bt, C, HWp, out_itemsize) > _VMEM_BUDGET_BYTES:
        bt -= 1
    if B >= 2:
        # Keep >= 2 grid steps so the parallel batch axis can shard across
        # v7x's two TensorCores (harmless on v5e/v6e, which have one TC).
        bt = min(bt, max(1, B // 2))
    return bt


def cbam_pallas(x_nchw, params, *, max_batch_tile=8,
                compute_dtype=jnp.float32, out_dtype=None):
    """CBAM forward.  x_nchw: (B, C, H, W) (PyTorch layout).

    compute_dtype: dtype for the 49-tap conv math and the ca/sa elementwise
      applications.  jnp.bfloat16 roughly doubles VPU throughput on v6e/v7x;
      keep jnp.float32 on v5e (no bf16 VALU there).
    out_dtype: output array dtype (bf16 halves HBM writeback on all gens).
    """
    w1, b1, w2, b2, conv_w, conv_b = params
    B, C, H, W = x_nchw.shape
    mid = w1.shape[1]
    HW = H * W
    HWp = max(LANE, ((HW + LANE - 1) // LANE) * LANE)   # lane-dense last dim
    out_dtype = jnp.dtype(x_nchw.dtype) if out_dtype is None else jnp.dtype(out_dtype)

    # NCHW-native: merge (H, W) into the lane axis (free reshape, no relayout).
    x = x_nchw.reshape(B, C, HW).astype(jnp.float32)
    if HWp != HW:
        x = jnp.pad(x, ((0, 0), (0, 0), (0, HWp - HW)))

    bt = _pick_batch_tile(B, C, HWp, max_batch_tile, out_dtype.itemsize)
    Bp = ((B + bt - 1) // bt) * bt
    if Bp != B:
        x = jnp.pad(x, ((0, Bp - B), (0, 0), (0, 0)))   # zero tail, dropped below

    c_chunk = math.gcd(C, 8)
    cw = conv_w[0].reshape(2, KSIZE * KSIZE).astype(jnp.float32)  # (2, 49) scalars
    cb = conv_b.reshape(1, 1).astype(jnp.float32)                 # (1, 1) scalar

    kernel = _make_cbam_kernel(H, W, HW, HWp, C, c_chunk, compute_dtype,
                               _roll_rolls_right())

    out = pl.pallas_call(
        kernel,
        out_shape=jax.ShapeDtypeStruct((Bp, C, HWp), out_dtype),
        grid_spec=pltpu.PrefetchScalarGridSpec(
            num_scalar_prefetch=0,
            grid=(Bp // bt,),
            in_specs=[
                pl.BlockSpec((bt, C, HWp), lambda b: (b, 0, 0)),
                pl.BlockSpec((C, mid), lambda b: (0, 0)),
                pl.BlockSpec((1, mid), lambda b: (0, 0)),
                pl.BlockSpec((mid, C), lambda b: (0, 0)),
                pl.BlockSpec((1, C), lambda b: (0, 0)),
                pl.BlockSpec((2, KSIZE * KSIZE), lambda b: (0, 0),
                             memory_space=pltpu.MemorySpace.SMEM),
                pl.BlockSpec((1, 1), lambda b: (0, 0),
                             memory_space=pltpu.MemorySpace.SMEM),
            ],
            out_specs=pl.BlockSpec((bt, C, HWp), lambda b: (b, 0, 0)),
        ),
        compiler_params=pltpu.CompilerParams(
            dimension_semantics=("parallel",),
            vmem_limit_bytes=_VMEM_LIMIT_BYTES),
    )(x, w1.astype(jnp.float32), b1.astype(jnp.float32),
      w2.astype(jnp.float32), b2.astype(jnp.float32), cw, cb)

    if Bp != B or HWp != HW:
        out = out[:B, :, :HW]
    return out.reshape(B, C, H, W)


def cbam_ref(x, params):
    """Pure-JAX reference matching the PyTorch CBAM module (NCHW)."""
    w1, b1, w2, b2, conv_w, conv_b = params

    def mlp(v):  # v: (B, C)
        return jnp.maximum(v @ w1 + b1, 0.0) @ w2 + b2

    avg = jnp.mean(x, axis=(2, 3))
    mx = jnp.max(x, axis=(2, 3))
    ca = jax.nn.sigmoid(mlp(avg) + mlp(mx))            # (B, C)
    out1 = x * ca[:, :, None, None]

    avg_c = jnp.mean(out1, axis=1, keepdims=True)
    max_c = jnp.max(out1, axis=1, keepdims=True)
    cat = jnp.concatenate([avg_c, max_c], axis=1)      # (B, 2, H, W)
    conv = lax.conv_general_dilated(
        cat, conv_w, window_strides=(1, 1),
        padding=((PAD, PAD), (PAD, PAD)),
        dimension_numbers=("NCHW", "OIHW", "NCHW"))
    sa = jax.nn.sigmoid(conv + conv_b.reshape(1, 1, 1, 1))
    return out1 * sa


if __name__ == "__main__":
    C = 16
    reduction = 8
    mid = C // reduction

    key = jax.random.PRNGKey(0)
    ks = jax.random.split(key, 8)

    # Deterministic synthetic parameters (shapes match the PyTorch module).
    w1 = jax.random.normal(ks[1], (C, mid), jnp.float32) * 0.2      # Linear(C->mid).weight.T
    b1 = jax.random.normal(ks[2], (1, mid), jnp.float32) * 0.1
    w2 = jax.random.normal(ks[3], (mid, C), jnp.float32) * 0.2      # Linear(mid->C).weight.T
    b2 = jax.random.normal(ks[4], (1, C), jnp.float32) * 0.1
    conv_w = jax.random.normal(ks[5], (1, 2, KSIZE, KSIZE), jnp.float32) * 0.1  # OIHW
    conv_b = jax.random.normal(ks[6], (1,), jnp.float32) * 0.1
    params = (w1, b1, w2, b2, conv_w, conv_b)

    # Test 1: lane-aligned spatial map (16x16 = 256 lanes), even batch.
    x1 = jax.random.normal(ks[0], (2, C, 16, 16), jnp.float32)
    out1 = jax.block_until_ready(cbam_pallas(x1, params))
    ref1 = cbam_ref(x1, params)
    np.testing.assert_allclose(np.asarray(out1), np.asarray(ref1),
                               atol=1e-4, rtol=1e-4)

    # Test 2: ragged spatial map (14x14 = 196 -> padded to 256 lanes) and an
    # odd batch (padded to a multiple of the batch tile).
    x2 = jax.random.normal(ks[7], (3, C, 14, 14), jnp.float32)
    out2 = jax.block_until_ready(cbam_pallas(x2, params))
    ref2 = cbam_ref(x2, params)
    np.testing.assert_allclose(np.asarray(out2), np.asarray(ref2),
                               atol=1e-4, rtol=1e-4)

    print("KERNEL_OK")
</pallas_src>

<mosaic_0001>
module attributes {stable_mosaic.version = 11 : i64} {
  func.func @probe(%arg0: memref<8x128xi32, #tpu.memory_space<vmem>>, %arg1: memref<8x128xi32, #tpu.memory_space<vmem>>) attributes {dimension_semantics = [], scalar_prefetch = 0 : i64, scratch_operands = 0 : i64, tpu.core_type = #tpu.core_type<tc>} {
    %c0 = arith.constant 0 : index
    %c0_0 = arith.constant 0 : index
    %0 = vector.load %arg0[%c0, %c0_0] : memref<8x128xi32, #tpu.memory_space<vmem>>, vector<8x128xi32>
    %c1_i32 = arith.constant 1 : i32
    %1 = tpu.dynamic_rotate %0 by %c1_i32 dim 1 : vector<8x128xi32>, i32 -> vector<8x128xi32>
    %c0_1 = arith.constant 0 : index
    %c0_2 = arith.constant 0 : index
    %2 = vector.load %arg1[%c0_1, %c0_2] : memref<8x128xi32, #tpu.memory_space<vmem>>, vector<8x128xi32>
    tpu.vector_store %arg1[%c0_1, %c0_2], %1 {strides = array<i32>} : memref<8x128xi32, #tpu.memory_space<vmem>>, vector<8x128xi32>,
    return
  }
}

</mosaic_0001>

<llo_original>
// kernel: tpu_custom_call.1
$region0: #{tpu_custom_call.1}
  #allocation0 [shape = 'u32[]', space=smem, size = 0x4, offset = 0x4, fixed_abs, tag = 'smem constant byte address 0x4 - core index']
  #allocation1 [shape = 'u32[144,128]{1,0:T(1,128)}', space=vmem, size = 0x12000, scoped, tag = 'internal scratch']
  %s0 = inlined_call_operand.hbm [shape: s32[8,128], index: 0, kind: input, shape index: {}]
  %s1 = inlined_call_operand.hbm [shape: s32[8,128], index: 1, kind: output, shape index: {}]
  %s2 = sld [smem:[#allocation0]]
  $region18: #{tpu_custom_call.1} parent=0
    _
  %s4 = ssub.s32 1, %s2
  %s5 = scalar_select 0, %s4, %s2
  $region1: #{tpu_custom_call.1} parent=0
    #allocation2 [shape = 'u8[4096]{0}', space=vmem, size = 0x1000, scoped, tag = 'input window, operand 0, single buffered']
    #allocation3 [shape = 's32[1]{0}', space=sflag, size = 0x4, scoped, tag = 'scoped memory for tpu_custom_call.1']
    #allocation4 [shape = 's32[1]{0}', space=sflag, size = 0x4, scoped, tag = 'scoped memory for tpu_custom_call.1']
    #allocation5 [shape = 'u8[4096]{0}', space=vmem, size = 0x1000, scoped, tag = 'output window, operand 0, single buffered']
    %6 = vsyncpa [#allocation3], 0
    %7 = vsyncpa [#allocation4], 0
    // Predicated region
    $region2: #{tpu_custom_call.1} parent=1 // pred_check
      _
    $region3: #{tpu_custom_call.1} parent=1 // pred_check_branch
      %9 = sbr.rel (0) target = $region5
    $region4: #{tpu_custom_call.1} parent=1 // pred_region
      %s11 = ssub.s32 128, 128
      %12 = vsyncadd [#allocation3], %s11
      %s14 = sshll.u32 [#allocation2], 4
      %s15 = int_to_ptr.vmem [resolvable:$true] %s14
      %17 = dma.hbm_to_vmem [thread:$0]  %s0, 128, %s15, [#allocation3]
    $region5: #{tpu_custom_call.1} parent=1 // pred_fallthru
      _
    // Predicated region
    $region6: #{tpu_custom_call.1} parent=1 // pred_check
      _
    $region7: #{tpu_custom_call.1} parent=1 // pred_check_branch
      %19 = sbr.rel (0) target = $region9
    $region8: #{tpu_custom_call.1} parent=1 // pred_region
      %20 = dma.done [#allocation3], 128
    $region9: #{tpu_custom_call.1} parent=1 // pred_fallthru
      _
    %v21 = vld [vmem:[#allocation2] sm:$0xff]
    %22 = vrot.lane.b32.xlu0 %v21, 1
    %v23 = vpop.permute.xlu0 %22
    %24 = vst [vmem:[#allocation5] sm:$0xff] %v23
    // Predicated region
    $region10: #{tpu_custom_call.1} parent=1 // pred_check
      _
    $region11: #{tpu_custom_call.1} parent=1 // pred_check_branch
      %26 = sbr.rel (0) target = $region13
    $region12: #{tpu_custom_call.1} parent=1 // pred_region
      %s28 = ssub.s32 128, 128
      %29 = vsyncadd [#allocation4], %s28
      %s31 = sshll.u32 [#allocation5], 4
      %s32 = int_to_ptr.vmem [resolvable:$true] %s31
      %34 = dma.vmem_to_hbm [thread:$0]  %s32, 128, %s1, [#allocation4]
    $region13: #{tpu_custom_call.1} parent=1 // pred_fallthru
      _
    // Predicated region
    $region14: #{tpu_custom_call.1} parent=1 // pred_check
      _
    $region15: #{tpu_custom_call.1} parent=1 // pred_check_branch
      %36 = sbr.rel (0) target = $region17
    $region16: #{tpu_custom_call.1} parent=1 // pred_region
      %37 = dma.done [#allocation4], 128
    $region17: #{tpu_custom_call.1} parent=1 // pred_fallthru
      _
    %38 = vsyncpa [#allocation3], 1
    %39 = vsyncpa [#allocation4], 1

</llo_original>
